<compile_context>
chip_gen: v7x
topology: tpu7x:2x2x1
jax: 0.10.0
libtpu: 0.0.40
codegen_flags: <defaults>
</compile_context>

<pallas_src>
import functools

import jax
import jax.numpy as jnp
from jax.experimental import pallas as pl
from jax.experimental.pallas import tpu as pltpu

LANE = 128


def dagnn_encoder_kernel(adj_ref, feats_ref, s_ref, out_ref, *, k):
    """One graph per grid step.

    adj_ref  : (1, N, N)  bf16, adj[v, u] = 1 iff edge u -> v
    feats_ref: (1, N, Hp) f32 node features (lane-padded with zeros)
    s_ref    : (1, Hp)    f32 gating vector as a lane-dense row (zero padded)
    out_ref  : (1, N, Hp) f32
    """
    n = adj_ref.shape[1]
    adj = adj_ref[0].astype(jnp.float32)          # (N, N); {0,1} exact from bf16
    h = feats_ref[0]                              # (N, Hp) f32
    s_row = s_ref[...]                            # (1, Hp) f32

    # In-degree normalization computed in-kernel (adj is already VMEM resident).
    degs = jnp.sum(adj, axis=1, keepdims=True)                        # (N, 1)
    # Guard zero-in-degree nodes (PyTorch's degs**-0.5 would give inf/NaN).
    norm = jnp.where(degs > 0.0, jax.lax.rsqrt(degs), 0.0)            # (N, 1)

    # (N,1) column -> (1,N) row without a transpose: place the values on the
    # diagonal of an (N,N) mask, then column-reduce.  Pure iota/select/reduce,
    # so it lowers trivially even for narrow shapes.
    row_ids = jax.lax.broadcasted_iota(jnp.int32, (n, n), 0)
    col_ids = jax.lax.broadcasted_iota(jnp.int32, (n, n), 1)
    norm_row = jnp.sum(jnp.where(row_ids == col_ids, norm, 0.0),
                       axis=0, keepdims=True)                         # (1, N)

    # Normalized adjacency, built once: A_hat = D^-1/2 A D^-1/2 (kept in f32).
    a_hat = (norm * adj) * norm_row                                   # (N, N)

    def gate(r):
        # sigmoid(r @ s): XLU lane-reduce + EUP sigmoid -> overlaps the MXU.
        return jax.nn.sigmoid(jnp.sum(r * s_row, axis=-1, keepdims=True))

    # Fused gating: accumulate sum_i sigmoid(H_i @ s) * H_i as hops are made,
    # instead of stacking k+1 hop outputs and looping again.
    acc = gate(h) * h
    for _ in range(k):
        h = jnp.dot(a_hat, h, preferred_element_type=jnp.float32)     # hop i+1
        acc = acc + gate(h) * h

    # Final residual of the PyTorch reference: combined + last-hop feats.
    out_ref[0] = acc + h


def dagnn_encoder(adj, feats, s, k):
    """adj: (B, N, N) {0,1}; feats: (B, N, H) f32; s: (H, 1) f32."""
    b, n, h = feats.shape
    hp = max(LANE, ((h + LANE - 1) // LANE) * LANE)   # lane-dense feature dim

    feats_p = jnp.pad(feats.astype(jnp.float32), ((0, 0), (0, 0), (0, hp - h)))
    s_row = jnp.pad(s.astype(jnp.float32).reshape(1, h), ((0, 0), (0, hp - h)))
    adj_bf16 = adj.astype(jnp.bfloat16)               # {0,1} -> lossless cast

    out = pl.pallas_call(
        functools.partial(dagnn_encoder_kernel, k=k),
        out_shape=jax.ShapeDtypeStruct((b, n, hp), jnp.float32),
        grid=(b,),
        in_specs=[
            pl.BlockSpec((1, n, n), lambda i: (i, 0, 0)),    # adj (per graph)
            pl.BlockSpec((1, n, hp), lambda i: (i, 0, 0)),   # feats (per graph)
            pl.BlockSpec((1, hp), lambda i: (0, 0)),         # s (shared)
        ],
        out_specs=pl.BlockSpec((1, n, hp), lambda i: (i, 0, 0)),
        compiler_params=pltpu.CompilerParams(
            dimension_semantics=("parallel",),
            vmem_limit_bytes=64 * 1024 * 1024),
    )(adj_bf16, feats_p, s_row)
    # TODO(synk): for graphs too large to keep adj VMEM-resident (N >~ 3.5k on
    # v7x), switch adj to memory_space=pl.ANY and stream column tiles per hop.
    return out[:, :, :h]


def dagnn_reference(adj, feats, s, k):
    """Pure-JAX mirror of the PyTorch forward (dense adjacency)."""
    degs = jnp.sum(adj, axis=-1)
    norm = jnp.power(degs, -0.5)[..., None]
    h = feats
    results = [h]
    for _ in range(k):
        h = h * norm
        h = jnp.einsum('bvu,buh->bvh', adj, h)
        h = h * norm
        results.append(h)
    stack = jnp.stack(results, axis=2)                          # (B, N, k+1, H)
    scores = jax.nn.sigmoid(jnp.einsum('bnkh,hi->bnki', stack, s))
    combined = jnp.einsum('bnki,bnkh->bnh', scores, stack)
    return combined + h


def xavier_uniform(key, shape, gain=1.0):
    fan_out, fan_in = shape[0], shape[1]
    bound = gain * jnp.sqrt(6.0 / (fan_in + fan_out))
    return jax.random.uniform(key, shape, dtype=jnp.float32,
                              minval=-bound, maxval=bound)


if __name__ == "__main__":
    B, N, H, K = 4, 16, 32, 4

    key = jax.random.PRNGKey(0)
    k_adj, k_feat, k_s = jax.random.split(key, 3)

    # Deterministic directed graphs: ring (every in-degree >= 1) + random edges.
    ring = jnp.roll(jnp.eye(N, dtype=jnp.float32), 1, axis=0)   # edge u -> u+1
    rand_edges = (jax.random.uniform(k_adj, (B, N, N)) < 0.25).astype(jnp.float32)
    adj = jnp.clip(rand_edges + ring[None], 0.0, 1.0)
    adj = adj * (1.0 - jnp.eye(N, dtype=jnp.float32))[None]     # drop self loops
    adj = jnp.clip(adj + ring[None], 0.0, 1.0)                  # keep ring edges

    feats = jax.random.normal(k_feat, (B, N, H), dtype=jnp.float32)
    s_param = xavier_uniform(k_s, (H, 1), gain=1.0)   # gain('sigmoid') == 1.0

    out = dagnn_encoder(adj, feats, s_param, K)
    jax.block_until_ready(out)
    assert out.shape == (B, N, H), out.shape

    ref = dagnn_reference(adj, feats, s_param, K)
    assert jnp.allclose(out, ref, rtol=1e-3, atol=1e-3), (
        "max abs err = %g" % float(jnp.max(jnp.abs(out - ref))))
    print("KERNEL_OK")
</pallas_src>

<mosaic_0001>
module attributes {stable_mosaic.version = 11 : i64} {
  func.func @dagnn_encoder_kernel(%arg0: i32, %arg1: memref<1x16x16xbf16, #tpu.memory_space<vmem>>, %arg2: memref<1x16x128xf32, #tpu.memory_space<vmem>>, %arg3: memref<1x128xf32, #tpu.memory_space<vmem>>, %arg4: memref<1x16x128xf32, #tpu.memory_space<vmem>>) attributes {dimension_semantics = [#tpu.dimension_semantics<parallel>], iteration_bounds = array<i64: 4>, scalar_prefetch = 0 : i64, scratch_operands = 0 : i64, tpu.core_type = #tpu.core_type<tc>, window_params = [{transform_indices = @transform_0, window_bounds = array<i64: 1, 16, 16>}, {transform_indices = @transform_1, window_bounds = array<i64: 1, 16, 128>}, {pipeline_mode = #tpu.pipeline_mode<synchronous>, transform_indices = @transform_2, window_bounds = array<i64: 1, 128>}, {transform_indices = @transform_3, window_bounds = array<i64: 1, 16, 128>}]} {
    %c0 = arith.constant 0 : index
    %c0_0 = arith.constant 0 : index
    %c0_1 = arith.constant 0 : index
    %0 = vector.load %arg1[%c0, %c0_0, %c0_1] : memref<1x16x16xbf16, #tpu.memory_space<vmem>>, vector<1x16x16xbf16>
    %1 = vector.shape_cast %0 : vector<1x16x16xbf16> to vector<16x16xbf16>
    %2 = arith.extf %1 : vector<16x16xbf16> to vector<16x16xf32>
    %c0_2 = arith.constant 0 : index
    %c0_3 = arith.constant 0 : index
    %c0_4 = arith.constant 0 : index
    %3 = vector.load %arg2[%c0_2, %c0_3, %c0_4] : memref<1x16x128xf32, #tpu.memory_space<vmem>>, vector<1x16x128xf32>
    %4 = vector.shape_cast %3 : vector<1x16x128xf32> to vector<16x128xf32>
    %c0_5 = arith.constant 0 : index
    %c0_6 = arith.constant 0 : index
    %5 = vector.load %arg3[%c0_5, %c0_6] : memref<1x128xf32, #tpu.memory_space<vmem>>, vector<1x128xf32>
    %cst = arith.constant dense<0.000000e+00> : vector<16xf32>
    %6 = vector.multi_reduction <add>, %2, %cst [1] : vector<16x16xf32> to vector<16xf32>
    %7 = vector.shape_cast %6 : vector<16xf32> to vector<16x1xf32>
    %cst_7 = arith.constant 0.000000e+00 : f32
    %8 = vector.broadcast %cst_7 : f32 to vector<16x1xf32>
    %9 = arith.cmpf ogt, %7, %8 : vector<16x1xf32>
    %10 = math.rsqrt %7 : vector<16x1xf32>
    %cst_8 = arith.constant 0.000000e+00 : f32
    %11 = vector.broadcast %cst_8 : f32 to vector<16x1xf32>
    %12 = arith.select %9, %10, %11 : vector<16x1xi1>, vector<16x1xf32>
    %13 = tpu.iota {dimensions = array<i32: 0>} : vector<16x16xi32>
    %14 = tpu.iota {dimensions = array<i32: 1>} : vector<16x16xi32>
    %15 = arith.cmpi eq, %13, %14 : vector<16x16xi32>
    %cst_9 = arith.constant 0.000000e+00 : f32
    %16 = vector.shape_cast %12 : vector<16x1xf32> to vector<16x1xf32>
    %17 = vector.broadcast %16 : vector<16x1xf32> to vector<16x16xf32>
    %18 = vector.broadcast %cst_9 : f32 to vector<16x16xf32>
    %19 = arith.select %15, %17, %18 : vector<16x16xi1>, vector<16x16xf32>
    %cst_10 = arith.constant dense<0.000000e+00> : vector<16xf32>
    %20 = vector.multi_reduction <add>, %19, %cst_10 [0] : vector<16x16xf32> to vector<16xf32>
    %21 = vector.shape_cast %20 : vector<16xf32> to vector<1x16xf32>
    %22 = vector.broadcast %12 : vector<16x1xf32> to vector<16x16xf32>
    %23 = arith.mulf %22, %2 : vector<16x16xf32>
    %24 = vector.broadcast %21 : vector<1x16xf32> to vector<16x16xf32>
    %25 = arith.mulf %23, %24 : vector<16x16xf32>
    %26 = vector.broadcast %5 : vector<1x128xf32> to vector<16x128xf32>
    %27 = arith.mulf %4, %26 : vector<16x128xf32>
    %cst_11 = arith.constant dense<0.000000e+00> : vector<16xf32>
    %28 = vector.multi_reduction <add>, %27, %cst_11 [1] : vector<16x128xf32> to vector<16xf32>
    %29 = vector.shape_cast %28 : vector<16xf32> to vector<16x1xf32>
    %30 = arith.negf %29 : vector<16x1xf32>
    %31 = math.exp %30 : vector<16x1xf32>
    %cst_12 = arith.constant 1.000000e+00 : f32
    %32 = vector.broadcast %cst_12 : f32 to vector<16x1xf32>
    %33 = arith.addf %32, %31 : vector<16x1xf32>
    %34 = arith.divf %32, %33 : vector<16x1xf32>
    %35 = vector.broadcast %34 : vector<16x1xf32> to vector<16x128xf32>
    %36 = arith.mulf %35, %4 : vector<16x128xf32>
    %cst_13 = arith.constant dense<0.000000e+00> : vector<16x128xf32>
    %37 = tpu.matmul %25, %4, %cst_13 {dimension_numbers = #tpu.dot_dimension_numbers<[1], [0], [0], [1], [0, 0, 1, 1], [], []>} : vector<16x16xf32>, vector<16x128xf32>, vector<16x128xf32> -> vector<16x128xf32>
    %38 = vector.broadcast %5 : vector<1x128xf32> to vector<16x128xf32>
    %39 = arith.mulf %37, %38 : vector<16x128xf32>
    %cst_14 = arith.constant dense<0.000000e+00> : vector<16xf32>
    %40 = vector.multi_reduction <add>, %39, %cst_14 [1] : vector<16x128xf32> to vector<16xf32>
    %41 = vector.shape_cast %40 : vector<16xf32> to vector<16x1xf32>
    %42 = arith.negf %41 : vector<16x1xf32>
    %43 = math.exp %42 : vector<16x1xf32>
    %cst_15 = arith.constant 1.000000e+00 : f32
    %44 = vector.broadcast %cst_15 : f32 to vector<16x1xf32>
    %45 = arith.addf %44, %43 : vector<16x1xf32>
    %46 = arith.divf %44, %45 : vector<16x1xf32>
    %47 = vector.broadcast %46 : vector<16x1xf32> to vector<16x128xf32>
    %48 = arith.mulf %47, %37 : vector<16x128xf32>
    %49 = arith.addf %36, %48 : vector<16x128xf32>
    %cst_16 = arith.constant dense<0.000000e+00> : vector<16x128xf32>
    %50 = tpu.matmul %25, %37, %cst_16 {dimension_numbers = #tpu.dot_dimension_numbers<[1], [0], [0], [1], [0, 0, 1, 1], [], []>} : vector<16x16xf32>, vector<16x128xf32>, vector<16x128xf32> -> vector<16x128xf32>
    %51 = vector.broadcast %5 : vector<1x128xf32> to vector<16x128xf32>
    %52 = arith.mulf %50, %51 : vector<16x128xf32>
    %cst_17 = arith.constant dense<0.000000e+00> : vector<16xf32>
    %53 = vector.multi_reduction <add>, %52, %cst_17 [1] : vector<16x128xf32> to vector<16xf32>
    %54 = vector.shape_cast %53 : vector<16xf32> to vector<16x1xf32>
    %55 = arith.negf %54 : vector<16x1xf32>
    %56 = math.exp %55 : vector<16x1xf32>
    %cst_18 = arith.constant 1.000000e+00 : f32
    %57 = vector.broadcast %cst_18 : f32 to vector<16x1xf32>
    %58 = arith.addf %57, %56 : vector<16x1xf32>
    %59 = arith.divf %57, %58 : vector<16x1xf32>
    %60 = vector.broadcast %59 : vector<16x1xf32> to vector<16x128xf32>
    %61 = arith.mulf %60, %50 : vector<16x128xf32>
    %62 = arith.addf %49, %61 : vector<16x128xf32>
    %cst_19 = arith.constant dense<0.000000e+00> : vector<16x128xf32>
    %63 = tpu.matmul %25, %50, %cst_19 {dimension_numbers = #tpu.dot_dimension_numbers<[1], [0], [0], [1], [0, 0, 1, 1], [], []>} : vector<16x16xf32>, vector<16x128xf32>, vector<16x128xf32> -> vector<16x128xf32>
    %64 = vector.broadcast %5 : vector<1x128xf32> to vector<16x128xf32>
    %65 = arith.mulf %63, %64 : vector<16x128xf32>
    %cst_20 = arith.constant dense<0.000000e+00> : vector<16xf32>
    %66 = vector.multi_reduction <add>, %65, %cst_20 [1] : vector<16x128xf32> to vector<16xf32>
    %67 = vector.shape_cast %66 : vector<16xf32> to vector<16x1xf32>
    %68 = arith.negf %67 : vector<16x1xf32>
    %69 = math.exp %68 : vector<16x1xf32>
    %cst_21 = arith.constant 1.000000e+00 : f32
    %70 = vector.broadcast %cst_21 : f32 to vector<16x1xf32>
    %71 = arith.addf %70, %69 : vector<16x1xf32>
    %72 = arith.divf %70, %71 : vector<16x1xf32>
    %73 = vector.broadcast %72 : vector<16x1xf32> to vector<16x128xf32>
    %74 = arith.mulf %73, %63 : vector<16x128xf32>
    %75 = arith.addf %62, %74 : vector<16x128xf32>
    %cst_22 = arith.constant dense<0.000000e+00> : vector<16x128xf32>
    %76 = tpu.matmul %25, %63, %cst_22 {dimension_numbers = #tpu.dot_dimension_numbers<[1], [0], [0], [1], [0, 0, 1, 1], [], []>} : vector<16x16xf32>, vector<16x128xf32>, vector<16x128xf32> -> vector<16x128xf32>
    %77 = vector.broadcast %5 : vector<1x128xf32> to vector<16x128xf32>
    %78 = arith.mulf %76, %77 : vector<16x128xf32>
    %cst_23 = arith.constant dense<0.000000e+00> : vector<16xf32>
    %79 = vector.multi_reduction <add>, %78, %cst_23 [1] : vector<16x128xf32> to vector<16xf32>
    %80 = vector.shape_cast %79 : vector<16xf32> to vector<16x1xf32>
    %81 = arith.negf %80 : vector<16x1xf32>
    %82 = math.exp %81 : vector<16x1xf32>
    %cst_24 = arith.constant 1.000000e+00 : f32
    %83 = vector.broadcast %cst_24 : f32 to vector<16x1xf32>
    %84 = arith.addf %83, %82 : vector<16x1xf32>
    %85 = arith.divf %83, %84 : vector<16x1xf32>
    %86 = vector.broadcast %85 : vector<16x1xf32> to vector<16x128xf32>
    %87 = arith.mulf %86, %76 : vector<16x128xf32>
    %88 = arith.addf %75, %87 : vector<16x128xf32>
    %89 = arith.addf %88, %76 : vector<16x128xf32>
    %c0_25 = arith.constant 0 : index
    %c0_26 = arith.constant 0 : index
    %c0_27 = arith.constant 0 : index
    %90 = vector.load %arg4[%c0_25, %c0_26, %c0_27] : memref<1x16x128xf32, #tpu.memory_space<vmem>>, vector<1x16x128xf32>
    %91 = vector.shape_cast %90 : vector<1x16x128xf32> to vector<16x128xf32>
    %92 = vector.shape_cast %89 : vector<16x128xf32> to vector<1x16x128xf32>
    tpu.vector_store %arg4[%c0_25, %c0_26, %c0_27], %92 {strides = array<i32>} : memref<1x16x128xf32, #tpu.memory_space<vmem>>, vector<1x16x128xf32>,
    return
  }
  func.func @transform_0(%arg0: i32) -> (i32, i32, i32) {
    %c0_i32 = arith.constant 0 : i32
    %c0_i32_0 = arith.constant 0 : i32
    %c0_i32_1 = arith.constant 0 : i32
    return %arg0, %c0_i32, %c0_i32_0 : i32, i32, i32
  }
  func.func @transform_1(%arg0: i32) -> (i32, i32, i32) {
    %c0_i32 = arith.constant 0 : i32
    %c0_i32_0 = arith.constant 0 : i32
    %c0_i32_1 = arith.constant 0 : i32
    return %arg0, %c0_i32, %c0_i32_0 : i32, i32, i32
  }
  func.func @transform_2(%arg0: i32) -> (i32, i32) {
    %c0_i32 = arith.constant 0 : i32
    %c0_i32_0 = arith.constant 0 : i32
    %c0_i32_1 = arith.constant 0 : i32
    return %c0_i32, %c0_i32_0 : i32, i32
  }
  func.func @transform_3(%arg0: i32) -> (i32, i32, i32) {
    %c0_i32 = arith.constant 0 : i32
    %c0_i32_0 = arith.constant 0 : i32
    %c0_i32_1 = arith.constant 0 : i32
    return %arg0, %c0_i32, %c0_i32_0 : i32, i32, i32
  }
}

</mosaic_0001>

<llo_original>
// kernel: tpu_custom_call.1
$region0: #{tpu_custom_call.1}
  #allocation0 [shape = 'u32[]', space=smem, size = 0x4, offset = 0x4, fixed_abs, tag = 'smem constant byte address 0x4 - core index']
  #allocation1 [shape = 'u32[144,128]{1,0:T(1,128)}', space=vmem, size = 0x12000, scoped, tag = 'internal scratch']
  %s0 = inlined_call_operand.hbm [shape: bf16[4,16,16], index: 0, kind: input, shape index: {}]
  %s1 = inlined_call_operand.hbm [shape: f32[4,16,128], index: 1, kind: input, shape index: {}]
  %s2 = inlined_call_operand.hbm [shape: f32[1,128], index: 2, kind: input, shape index: {}]
  %s3 = inlined_call_operand.hbm [shape: f32[4,16,128], index: 3, kind: output, shape index: {}]
  %s4 = sld [smem:[#allocation0]]
  $region57: #{tpu_custom_call.1} parent=0
    _
  %s6 = ssub.s32 1, %s4
  %s7 = scalar_select 0, %s6, %s4
  $region1: #{tpu_custom_call.1} parent=0
    #allocation2 [shape = 'u8[8192]{0}', space=vmem, size = 0x2000, scoped, tag = 'input window, operand 0']
    #allocation3 [shape = 's32[2]{0}', space=sflag, size = 0x8, scoped, tag = 'scoped memory for tpu_custom_call.1']
    #allocation4 [shape = 's32[2]{0}', space=sflag, size = 0x8, scoped, tag = 'scoped memory for tpu_custom_call.1']
    #allocation5 [shape = 'u8[16384]{0}', space=vmem, size = 0x4000, scoped, tag = 'input window, operand 1']
    #allocation6 [shape = 's32[2]{0}', space=sflag, size = 0x8, scoped, tag = 'scoped memory for tpu_custom_call.1']
    #allocation7 [shape = 'u8[512]{0}', space=vmem, size = 0x400, scoped, tag = 'input window, operand 2, single buffered']
    #allocation8 [shape = 'u8[16384]{0}', space=vmem, size = 0x4000, scoped, tag = 'output window, operand 0']
    %8 = vsyncpa [#allocation3], 0
    %s9 = scalar_lea.sflag [#allocation3], 1
    %10 = vsyncpa %s9, 0
    %11 = vsyncpa [#allocation6], 0
    %s12 = scalar_lea.sflag [#allocation6], 1
    %13 = vsyncpa %s12, 0
    %14 = vsyncpa [#allocation4], 0
    %s15 = scalar_lea.sflag [#allocation4], 1
    %16 = vsyncpa %s15, 0
    loop: start=0, step=1, limit=6
    $region2: #{tpu_custom_call.1} parent=1 // loop_pre_header
      _
    $region3: #{tpu_custom_call.1} parent=1 // loop_header
      %s18 = sphi 0, %s22
      %p19 = scmp.ge.s32.totalorder %s18, 6
      %s28 = sphi 0, %s30
      %s31 = sphi 0, %s28
      %s32 = sphi 0, %s31
      %s48 = sphi 0, %s32
      %s54 = sphi 0, %s56
      %s57 = sphi 0, %s54
      %s58 = sphi 0, %s57
      %s74 = sphi 0, %s58
      %s78 = sphi 0, %s78
      %s80 = sphi 0, %s78
      %s81 = sphi 0, %s80
      %s95 = sphi 0, %s81
      %s101 = sphi 0, %s103
      %s104 = sphi 0, %s101
      %s105 = sphi 0, %s104
      %s121 = sphi 0, %s105
    $region4: #{tpu_custom_call.1} parent=1 // loop_header_branch
      %21 = sbr.rel (%p19) target = $region8
    $region5: #{tpu_custom_call.1} parent=1 // loop_body
      %s23 = ssub.s32 %s18, 1
      %s24 = ssub.s32 %s18, 2
      %s25 = sadd.s32 %s18, 1
      %s26 = ssub.s32 %s18, %s25
      %p27 = scmp.eq.s32.totalorder %s26, 0
      %s29 = sadd.s32 %s28, 1
      %s30 = scalar_select %p27, %s28, %s29
      %p33 = pneg %p27
      %p34 = scmp.eq.s32.totalorder %s18, 3
      %p35 = por %p33, %p34
      %p36 = scmp.ne.s32.totalorder %s28, %s31
      %p37 = scmp.eq.s32.totalorder %s18, 0
      %p38 = por %p36, %p37
      %p39 = scmp.ne.s32.totalorder %s28, %s31
      %p40 = scmp.eq.s32.totalorder %s23, 3
      %p41 = por %p39, %p40
      %p42 = scmp.ne.s32.totalorder %s31, %s32
      %p43 = scmp.eq.s32.totalorder %s23, 0
      %p44 = por %p42, %p43
      %p45 = scmp.ne.s32.totalorder %s31, %s32
      %p46 = scmp.eq.s32.totalorder %s24, 3
      %p47 = por %p45, %p46
      %p49 = scmp.ne.s32.totalorder %s32, %s48
      %p50 = scmp.eq.s32.totalorder %s24, 0
      %p51 = por %p49, %p50
      %s52 = ssub.s32 %s18, %s25
      %p53 = scmp.eq.s32.totalorder %s52, 0
      %s55 = sadd.s32 %s54, 1
      %s56 = scalar_select %p53, %s54, %s55
      %p59 = pneg %p53
      %p60 = scmp.eq.s32.totalorder %s18, 3
      %p61 = por %p59, %p60
      %p62 = scmp.ne.s32.totalorder %s54, %s57
      %p63 = scmp.eq.s32.totalorder %s18, 0
      %p64 = por %p62, %p63
      %p65 = scmp.ne.s32.totalorder %s54, %s57
      %p66 = scmp.eq.s32.totalorder %s23, 3
      %p67 = por %p65, %p66
      %p68 = scmp.ne.s32.totalorder %s57, %s58
      %p69 = scmp.eq.s32.totalorder %s23, 0
      %p70 = por %p68, %p69
      %p71 = scmp.ne.s32.totalorder %s57, %s58
      %p72 = scmp.eq.s32.totalorder %s24, 3
      %p73 = por %p71, %p72
      %p75 = scmp.ne.s32.totalorder %s58, %s74
      %p76 = scmp.eq.s32.totalorder %s24, 0
      %p77 = por %p75, %p76
      %s79 = sadd.s32 %s78, 1
      %p82 = scmp.eq.s32.totalorder %s18, 3
      %p83 = scmp.ne.s32.totalorder %s78, %s80
      %p84 = scmp.eq.s32.totalorder %s18, 0
      %p85 = por %p83, %p84
      %p86 = scmp.ne.s32.totalorder %s78, %s80
      %p87 = scmp.eq.s32.totalorder %s23, 3
      %p88 = por %p86, %p87
      %p89 = scmp.ne.s32.totalorder %s80, %s81
      %p90 = scmp.eq.s32.totalorder %s23, 0
      %p91 = por %p89, %p90
      %p92 = scmp.ne.s32.totalorder %s80, %s81
      %p93 = scmp.eq.s32.totalorder %s24, 3
      %p94 = por %p92, %p93
      %p96 = scmp.ne.s32.totalorder %s81, %s95
      %p97 = scmp.eq.s32.totalorder %s24, 0
      %p98 = por %p96, %p97
      %s99 = ssub.s32 %s18, %s25
      %p100 = scmp.eq.s32.totalorder %s99, 0
      %s102 = sadd.s32 %s101, 1
      %s103 = scalar_select %p100, %s101, %s102
      %p106 = pneg %p100
      %p107 = scmp.eq.s32.totalorder %s18, 3
      %p108 = por %p106, %p107
      %p109 = scmp.ne.s32.totalorder %s101, %s104
      %p110 = scmp.eq.s32.totalorder %s18, 0
      %p111 = por %p109, %p110
      %p112 = scmp.ne.s32.totalorder %s101, %s104
      %p113 = scmp.eq.s32.totalorder %s23, 3
      %p114 = por %p112, %p113
      %p115 = scmp.ne.s32.totalorder %s104, %s105
      %p116 = scmp.eq.s32.totalorder %s23, 0
      %p117 = por %p115, %p116
      %p118 = scmp.ne.s32.totalorder %s104, %s105
      %p119 = scmp.eq.s32.totalorder %s24, 3
      %p120 = por %p118, %p119
      %p122 = scmp.ne.s32.totalorder %s105, %s121
      %p123 = scmp.eq.s32.totalorder %s24, 0
      %p124 = por %p122, %p123
      %p125 = scmp.le.s32.totalorder 1, %s18
      %p126 = scmp.lt.s32.totalorder %s18, 5
      %p127 = pnand %p125, %p126
      %p128 = pneg %p127
      // Predicated region
      $region9: #{tpu_custom_call.1} parent=5 // pred_check
        _
      $region10: #{tpu_custom_call.1} parent=5 // pred_check_branch
        %130 = sbr.rel (%p127) target = $region12
      $region11: #{tpu_custom_call.1} parent=5 // pred_region
        %s131 = ssub.s32 %s18, 1
        // Predicated region
        $region13: #{tpu_custom_call.1} parent=11 // pred_check
          %p132 = pneg %p91
        $region14: #{tpu_custom_call.1} parent=11 // pred_check_branch
          %134 = sbr.rel (%p132) target = $region16
        $region15: #{tpu_custom_call.1} parent=11 // pred_region
          %s136 = ssub.s32 16, 16
          %137 = vsyncadd [#allocation6], %s136
          %s139 = sshll.u32 [#allocation7], 4
          %s140 = int_to_ptr.vmem [resolvable:$true] %s139
          %142 = dma.hbm_to_vmem [thread:$0]  %s2, 16, %s140, [#allocation6]
        $region16: #{tpu_custom_call.1} parent=11 // pred_fallthru
          _
      $region12: #{tpu_custom_call.1} parent=5 // pred_fallthru
        _
      %p143 = scmp.lt.s32.totalorder %s18, 4
      // Predicated region
      $region17: #{tpu_custom_call.1} parent=5 // pred_check
        %p144 = pneg %p143
      $region18: #{tpu_custom_call.1} parent=5 // pred_check_branch
        %146 = sbr.rel (%p144) target = $region20
      $region19: #{tpu_custom_call.1} parent=5 // pred_region
        // Predicated region
        $region21: #{tpu_custom_call.1} parent=19 // pred_check
          %p147 = pneg %p38
        $region22: #{tpu_custom_call.1} parent=19 // pred_check_branch
          %149 = sbr.rel (%p147) target = $region24
        $region23: #{tpu_custom_call.1} parent=19 // pred_region
          %s150 = sand.u32 %s28, 1
          %s151 = scalar_lea.sflag [#allocation3], %s150
          %s152 = sand.u32 %s28, 1
          %s153 = smul.addr %s152, 8
          %s154 = scalar_lea.vmem [#allocation2], %s153
          %s156 = ssub.s32 128, 128
          %157 = vsyncadd %s151, %s156
          %s158 = smul.addr %s18, 2
          %s159 = smul.addr %s158, 64
          %s160 = scalar_lea.hbm %s0, %s159
          %s161 = sshll.u32 %s154, 4
          %s162 = int_to_ptr.vmem [resolvable:$true] %s161
          %167 = dma.hbm_to_vmem [thread:$0]  %s160, 128, %s162, %s151, 64, 64, 4
        $region24: #{tpu_custom_call.1} parent=19 // pred_fallthru
          _
        // Predicated region
        $region25: #{tpu_custom_call.1} parent=19 // pred_check
          %p168 = pneg %p64
        $region26: #{tpu_custom_call.1} parent=19 // pred_check_branch
          %170 = sbr.rel (%p168) target = $region28
        $region27: #{tpu_custom_call.1} parent=19 // pred_region
          %s171 = sand.u32 %s18, 1
          %s172 = scalar_lea.sflag [#allocation6], %s171
          %s173 = sand.u32 %s54, 1
          %s174 = smul.addr %s173, 16
          %s175 = scalar_lea.vmem [#allocation5], %s174
          %s177 = ssub.s32 256, 256
          %178 = vsyncadd %s172, %s177
          %s179 = smul.addr %s18, 2
          %s180 = smul.addr %s179, 128
          %s181 = scalar_lea.hbm %s1, %s180
          %s182 = sshll.u32 %s175, 4
          %s183 = int_to_ptr.vmem [resolvable:$true] %s182
          %188 = dma.hbm_to_vmem [thread:$0]  %s181, 256, %s183, %s172, 128, 128, 8
        $region28: #{tpu_custom_call.1} parent=19 // pred_fallthru
          _
      $region20: #{tpu_custom_call.1} parent=5 // pred_fallthru
        _
      %p189 = scmp.le.s32.totalorder 1, %s18
      %p190 = scmp.lt.s32.totalorder %s18, 5
      %p191 = pnand %p189, %p190
      %p192 = pneg %p191
      // Predicated region
      $region29: #{tpu_custom_call.1} parent=5 // pred_check
        _
      $region30: #{tpu_custom_call.1} parent=5 // pred_check_branch
        %194 = sbr.rel (%p191) target = $region32
      $region31: #{tpu_custom_call.1} parent=5 // pred_region
        %s195 = ssub.s32 %s18, 1
        %s196 = sand.u32 %s31, 1
        %s197 = scalar_lea.sflag [#allocation3], %s196
        %s198 = sand.u32 %s31, 1
        %s199 = smul.addr %s198, 8
        %s200 = scalar_lea.vmem [#allocation2], %s199
        // Predicated region
        $region33: #{tpu_custom_call.1} parent=31 // pred_check
          %p201 = pneg %p44
        $region34: #{tpu_custom_call.1} parent=31 // pred_check_branch
          %203 = sbr.rel (%p201) target = $region36
        $region35: #{tpu_custom_call.1} parent=31 // pred_region
          %204 = dma.done %s197, 128
        $region36: #{tpu_custom_call.1} parent=31 // pred_fallthru
          _
        %s205 = sand.u32 %s23, 1
        %s206 = scalar_lea.sflag [#allocation6], %s205
        %s207 = sand.u32 %s57, 1
        %s208 = smul.addr %s207, 16
        %s209 = scalar_lea.vmem [#allocation5], %s208
        // Predicated region
        $region37: #{tpu_custom_call.1} parent=31 // pred_check
          %p210 = pneg %p70
        $region38: #{tpu_custom_call.1} parent=31 // pred_check_branch
          %212 = sbr.rel (%p210) target = $region40
        $region39: #{tpu_custom_call.1} parent=31 // pred_region
          %213 = dma.done %s206, 256
        $region40: #{tpu_custom_call.1} parent=31 // pred_fallthru
          _
        // Predicated region
        $region41: #{tpu_custom_call.1} parent=31 // pred_check
          %p214 = pneg %p91
        $region42: #{tpu_custom_call.1} parent=31 // pred_check_branch
          %216 = sbr.rel (%p214) target = $region44
        $region43: #{tpu_custom_call.1} parent=31 // pred_region
          %217 = dma.done [#allocation6], 16
        $region44: #{tpu_custom_call.1} parent=31 // pred_fallthru
          _
        %s218 = sand.u32 %s31, 1
        %s219 = scalar_lea.sflag [#allocation3], %s218
        %s220 = sand.u32 %s31, 1
        %s221 = smul.addr %s220, 8
        %s222 = scalar_lea.vmem [#allocation2], %s221
        %p223 = pneg %p44
        %p224 = pneg %p41
        %s225 = sand.u32 %s23, 1
        %s226 = scalar_lea.sflag [#allocation6], %s225
        %s227 = sand.u32 %s57, 1
        %s228 = smul.addr %s227, 16
        %s229 = scalar_lea.vmem [#allocation5], %s228
        %p230 = pneg %p70
        %p231 = pneg %p67
        %p232 = pneg %p91
        %p233 = pneg %p88
        %p234 = pneg %p117
        %p235 = pneg %p114
        %s236 = sand.u32 %s104, 1
        %s237 = scalar_lea.sflag [#allocation4], %s236
        %s238 = sand.u32 %s104, 1
        %s239 = smul.addr %s238, 16
        %s240 = scalar_lea.vmem [#allocation8], %s239
        %v241 = vld [vmem:[%s200] sm:$0xf]
        %v242 = vld [vmem:[%s200 + $0x4] sm:$0xf]
        %v243 = vunpack.c.l.bf16 %v241
        %v244 = vunpack.c.l.bf16 %v242
        %v245 = vld [vmem:[%s209] sm:$0xff]
        %v246 = vld [vmem:[%s209 + $0x8] sm:$0xff]
        %v247 = vld [vmem:[#allocation7] sm:$0x1]
        %vm248 = vcmask 130048
        %v249 = vsel %vm248, %v243, 0.0
        %250 = vadd.xlane.f32.xlu0 %v249
        %v251 = vpop.xlane.xlu0 %250
        %v252 = vsel %vm248, %v244, 0.0
        %253 = vadd.xlane.f32.xlu0 %v252
        %v254 = vpop.xlane.xlu0 %253
        %vm255 = vcmp.gt.f32.partialorder %v251, 0.0
        %vm256 = vcmp.gt.f32.partialorder %v254, 0.0
        %v257 = vrsqrt.pop %v251
        %v258 = vrsqrt.pop %v254
        %v259 = vsel %vm255, %v257, 0.0
        %v260 = vsel %vm256, %v258, 0.0
        %v261 = vlaneseq
        %v262 = vshrl.u32 %v261, 7
        %v263 = vadd.s32 %v262, 8
        %v264 = vlaneseq
        %v265 = vand.u32 %v264, 127
        %vm266 = vcmp.eq.s32.totalorder %v262, %v265
        %vm267 = vcmp.eq.s32.totalorder %v263, %v265
        %v268 = vsel %vm266, %v259, 0.0
        %v269 = vsel %vm267, %v260, 0.0
        %v270 = vsel %vm248, %v268, 0.0
        %v271 = vsel %vm248, %v269, 0.0
        %v272 = vadd.f32 %v270, %v271
        %v273 = vrot.slane %v272, 4
        %v274 = vadd.f32 %v272, %v273
        %v275 = vrot.slane %v274, 2
        %v276 = vadd.f32 %v274, %v275
        %v277 = vrot.slane %v276, 1
        %v278 = vadd.f32 %v276, %v277
        %v279 = vmul.f32 %v259, %v243
        %v280 = vmul.f32 %v260, %v244
        %v281 = vmul.f32 %v279, %v278
        %v282 = vmul.f32 %v280, %v278
        %v284 = vlaneseq
        %v285 = vshrl.u32 %v284, 7
        %v286 = vsub.s32 0, %v285
        %v287 = vrot.slane %v247, %v286
        %v289 = vmul.f32 %v245, %v287
        %v290 = vmul.f32 %v246, %v287
        %291 = vadd.xlane.f32.xlu0 %v289
        %v292 = vpop.xlane.xlu0 %291
        %293 = vadd.xlane.f32.xlu0 %v290
        %v294 = vpop.xlane.xlu0 %293
        %v295 = vxor.u32 %v292, 2147483648
        %v296 = vxor.u32 %v294, 2147483648
        %v297 = vmul.f32 %v295, 1.442695
        %v298 = vpow.pop %v297
        %v299 = vmul.f32 %v296, 1.442695
        %v300 = vpow.pop %v299
        %v301 = vadd.f32 %v298, 1.0
        %v302 = vadd.f32 %v300, 1.0
        %v303 = vrcp.pop %v301
        %v304 = vmul.f32 1.0, %v303
        %v305 = vrcp.pop %v302
        %v306 = vmul.f32 1.0, %v305
        %v307 = vmul.f32 %v304, %v245
        %v308 = vmul.f32 %v306, %v246
        %v310 = vsel %vm248, %v281, 0
        %v313 = vsel %vm248, %v282, 0
        %315 = vmatprep.subr.mxu0 0.0
        %316 = vmatpush1.msra.mxu0 %v245
        %317 = vmatprep.subr.mxu0 0.0
        %318 = vmatpush1.msra.mxu0 %v246
        %319 = vmatprep.subr.mxu0 0.0
        %320 = vmatpush1.msra.mxu0 0.0
        %321 = vmatprep.subr.mxu0 0.0
        %322 = vmatpush1.msra.mxu0 0.0
        %323 = vmatprep.subr.mxu0 0.0
        %324 = vmatpush1.msra.mxu0 0.0
        %325 = vmatprep.subr.mxu0 0.0
        %326 = vmatpush1.msra.mxu0 0.0
        %327 = vmatprep.subr.mxu0 0.0
        %328 = vmatpush1.msra.mxu0 0.0
        %329 = vmatprep.subr.mxu0 0.0
        %330 = vmatpush1.msra.mxu0 0.0
        %331 = vmatprep.subr.mxu0 0.0
        %332 = vmatpush1.msra.mxu0 0.0
        %333 = vmatprep.subr.mxu0 0.0
        %334 = vmatpush1.msra.mxu0 0.0
        %335 = vmatprep.subr.mxu0 0.0
        %336 = vmatpush1.msra.mxu0 0.0
        %337 = vmatprep.subr.mxu0 0.0
        %338 = vmatpush1.msra.mxu0 0.0
        %339 = vmatprep.subr.mxu0 0.0
        %340 = vmatpush1.msra.mxu0 0.0
        %341 = vmatprep.subr.mxu0 0.0
        %342 = vmatpush1.msra.mxu0 0.0
        %343 = vmatprep.subr.mxu0 0.0
        %344 = vmatpush1.msra.mxu0 0.0
        %345 = vmatprep.subr.mxu0 0.0
        %346 = vmatpush1.msra.mxu0 0.0
        %347 = vmatprep.subr.mxu0 0.0
        %348 = vmatpush1.msra.mxu0 0.0
        %349 = vmatprep.subr.mxu0 0.0
        %350 = vmatpush1.msra.mxu0 0.0
        %351 = vmatprep.subr.mxu0 0.0
        %352 = vmatpush1.msra.mxu0 0.0
        %353 = vmatprep.subr.mxu0 0.0
        %354 = vmatpush1.msra.mxu0 0.0
        %355 = vmatprep.subr.mxu0 0.0
        %356 = vmatpush1.msra.mxu0 0.0
        %357 = vmatprep.subr.mxu0 0.0
        %358 = vmatpush1.msra.mxu0 0.0
        %359 = vmatprep.subr.mxu0 0.0
        %360 = vmatpush1.msra.mxu0 0.0
        %361 = vmatprep.subr.mxu0 0.0
        %362 = vmatpush1.msra.mxu0 0.0
        %363 = vmatprep.subr.mxu0 0.0
        %364 = vmatpush1.msra.mxu0 0.0
        %365 = vmatprep.subr.mxu0 0.0
        %366 = vmatpush1.msra.mxu0 0.0
        %367 = vmatprep.subr.mxu0 0.0
        %368 = vmatpush1.msra.mxu0 0.0
        %369 = vmatprep.subr.mxu0 0.0
        %370 = vmatpush1.msra.mxu0 0.0
        %371 = vmatprep.subr.mxu0 0.0
        %372 = vmatpush1.msra.mxu0 0.0
        %373 = vmatprep.subr.mxu0 0.0
        %374 = vmatpush1.msra.mxu0 0.0
        %375 = vmatprep.subr.mxu0 0.0
        %376 = vmatpush1.msra.mxu0 0.0
        %377 = vmatprep.subr.mxu0 0.0
        %378 = vmatpush1.msra.mxu0 0.0
        %379 = vmatprep.mubr.f32.mxu0 0.0
        %380 = vmatmul.mubr.f32.gmra.mrb[0].mxu0 %v310
        %v381 = vpop.f32.mrb[0].mxu0
        %v382 = vadd.f32 0.0, %v381
        %v383 = vpop.f32.mrb[0].mxu0
        %384 = vmatprep.mubr.f32.mxu0 0.0
        %385 = vmatmul.mubr.f32.gmra.mrb[0].mxu0 %v313
        %v386 = vpop.f32.mrb[0].mxu0
        %v387 = vadd.f32 0.0, %v386
        %v388 = vpop.f32.mrb[0].mxu0
        %389 = vdwg.mxu0
        %v390 = vmul.f32 %v382, %v287
        %v391 = vmul.f32 %v387, %v287
        %392 = vadd.xlane.f32.xlu0 %v390
        %v393 = vpop.xlane.xlu0 %392
        %394 = vadd.xlane.f32.xlu0 %v391
        %v395 = vpop.xlane.xlu0 %394
        %v396 = vxor.u32 %v393, 2147483648
        %v397 = vxor.u32 %v395, 2147483648
        %v398 = vmul.f32 %v396, 1.442695
        %v399 = vpow.pop %v398
        %v400 = vmul.f32 %v397, 1.442695
        %v401 = vpow.pop %v400
        %v402 = vadd.f32 %v399, 1.0
        %v403 = vadd.f32 %v401, 1.0
        %v404 = vrcp.pop %v402
        %v405 = vmul.f32 1.0, %v404
        %v406 = vrcp.pop %v403
        %v407 = vmul.f32 1.0, %v406
        %v408 = vmul.f32 %v405, %v382
        %v409 = vmul.f32 %v407, %v387
        %v410 = vadd.f32 %v307, %v408
        %v411 = vadd.f32 %v308, %v409
        %412 = vmatprep.subr.mxu0 0.0
        %413 = vmatpush1.msra.mxu0 %v382
        %414 = vmatprep.subr.mxu0 0.0
        %415 = vmatpush1.msra.mxu0 %v387
        %416 = vmatprep.subr.mxu0 0.0
        %417 = vmatpush1.msra.mxu0 0.0
        %418 = vmatprep.subr.mxu0 0.0
        %419 = vmatpush1.msra.mxu0 0.0
        %420 = vmatprep.subr.mxu0 0.0
        %421 = vmatpush1.msra.mxu0 0.0
        %422 = vmatprep.subr.mxu0 0.0
        %423 = vmatpush1.msra.mxu0 0.0
        %424 = vmatprep.subr.mxu0 0.0
        %425 = vmatpush1.msra.mxu0 0.0
        %426 = vmatprep.subr.mxu0 0.0
        %427 = vmatpush1.msra.mxu0 0.0
        %428 = vmatprep.subr.mxu0 0.0
        %429 = vmatpush1.msra.mxu0 0.0
        %430 = vmatprep.subr.mxu0 0.0
        %431 = vmatpush1.msra.mxu0 0.0
        %432 = vmatprep.subr.mxu0 0.0
        %433 = vmatpush1.msra.mxu0 0.0
        %434 = vmatprep.subr.mxu0 0.0
        %435 = vmatpush1.msra.mxu0 0.0
        %436 = vmatprep.subr.mxu0 0.0
        %437 = vmatpush1.msra.mxu0 0.0
        %438 = vmatprep.subr.mxu0 0.0
        %439 = vmatpush1.msra.mxu0 0.0
        %440 = vmatprep.subr.mxu0 0.0
        %441 = vmatpush1.msra.mxu0 0.0
        %442 = vmatprep.subr.mxu0 0.0
        %443 = vmatpush1.msra.mxu0 0.0
        %444 = vmatprep.subr.mxu0 0.0
        %445 = vmatpush1.msra.mxu0 0.0
        %446 = vmatprep.subr.mxu0 0.0
        %447 = vmatpush1.msra.mxu0 0.0
        %448 = vmatprep.subr.mxu0 0.0
        %449 = vmatpush1.msra.mxu0 0.0
        %450 = vmatprep.subr.mxu0 0.0
        %451 = vmatpush1.msra.mxu0 0.0
        %452 = vmatprep.subr.mxu0 0.0
        %453 = vmatpush1.msra.mxu0 0.0
        %454 = vmatprep.subr.mxu0 0.0
        %455 = vmatpush1.msra.mxu0 0.0
        %456 = vmatprep.subr.mxu0 0.0
        %457 = vmatpush1.msra.mxu0 0.0
        %458 = vmatprep.subr.mxu0 0.0
        %459 = vmatpush1.msra.mxu0 0.0
        %460 = vmatprep.subr.mxu0 0.0
        %461 = vmatpush1.msra.mxu0 0.0
        %462 = vmatprep.subr.mxu0 0.0
        %463 = vmatpush1.msra.mxu0 0.0
        %464 = vmatprep.subr.mxu0 0.0
        %465 = vmatpush1.msra.mxu0 0.0
        %466 = vmatprep.subr.mxu0 0.0
        %467 = vmatpush1.msra.mxu0 0.0
        %468 = vmatprep.subr.mxu0 0.0
        %469 = vmatpush1.msra.mxu0 0.0
        %470 = vmatprep.subr.mxu0 0.0
        %471 = vmatpush1.msra.mxu0 0.0
        %472 = vmatprep.subr.mxu0 0.0
        %473 = vmatpush1.msra.mxu0 0.0
        %474 = vmatprep.subr.mxu0 0.0
        %475 = vmatpush1.msra.mxu0 0.0
        %476 = vmatprep.mubr.f32.mxu0 0.0
        %477 = vmatmul.mubr.f32.gmra.mrb[0].mxu0 %v310
        %v478 = vpop.f32.mrb[0].mxu0
        %v479 = vadd.f32 0.0, %v478
        %v480 = vpop.f32.mrb[0].mxu0
        %481 = vmatprep.mubr.f32.mxu0 0.0
        %482 = vmatmul.mubr.f32.gmra.mrb[0].mxu0 %v313
        %v483 = vpop.f32.mrb[0].mxu0
        %v484 = vadd.f32 0.0, %v483
        %v485 = vpop.f32.mrb[0].mxu0
        %486 = vdwg.mxu0
        %v487 = vmul.f32 %v479, %v287
        %v488 = vmul.f32 %v484, %v287
        %489 = vadd.xlane.f32.xlu0 %v487
        %v490 = vpop.xlane.xlu0 %489
        %491 = vadd.xlane.f32.xlu0 %v488
        %v492 = vpop.xlane.xlu0 %491
        %v493 = vxor.u32 %v490, 2147483648
        %v494 = vxor.u32 %v492, 2147483648
        %v495 = vmul.f32 %v493, 1.442695
        %v496 = vpow.pop %v495
        %v497 = vmul.f32 %v494, 1.442695
        %v498 = vpow.pop %v497
        %v499 = vadd.f32 %v496, 1.0
        %v500 = vadd.f32 %v498, 1.0
        %v501 = vrcp.pop %v499
        %v502 = vmul.f32 1.0, %v501
        %v503 = vrcp.pop %v500
        %v504 = vmul.f32 1.0, %v503
        %v505 = vmul.f32 %v502, %v479
        %v506 = vmul.f32 %v504, %v484
        %v507 = vadd.f32 %v410, %v505
        %v508 = vadd.f32 %v411, %v506
        %509 = vmatprep.subr.mxu0 0.0
        %510 = vmatpush1.msra.mxu0 %v479
        %511 = vmatprep.subr.mxu0 0.0
        %512 = vmatpush1.msra.mxu0 %v484
        %513 = vmatprep.subr.mxu0 0.0
        %514 = vmatpush1.msra.mxu0 0.0
        %515 = vmatprep.subr.mxu0 0.0
        %516 = vmatpush1.msra.mxu0 0.0
        %517 = vmatprep.subr.mxu0 0.0
        %518 = vmatpush1.msra.mxu0 0.0
        %519 = vmatprep.subr.mxu0 0.0
        %520 = vmatpush1.msra.mxu0 0.0
        %521 = vmatprep.subr.mxu0 0.0
        %522 = vmatpush1.msra.mxu0 0.0
        %523 = vmatprep.subr.mxu0 0.0
        %524 = vmatpush1.msra.mxu0 0.0
        %525 = vmatprep.subr.mxu0 0.0
        %526 = vmatpush1.msra.mxu0 0.0
        %527 = vmatprep.subr.mxu0 0.0
        %528 = vmatpush1.msra.mxu0 0.0
        %529 = vmatprep.subr.mxu0 0.0
        %530 = vmatpush1.msra.mxu0 0.0
        %531 = vmatprep.subr.mxu0 0.0
        %532 = vmatpush1.msra.mxu0 0.0
        %533 = vmatprep.subr.mxu0 0.0
        %534 = vmatpush1.msra.mxu0 0.0
        %535 = vmatprep.subr.mxu0 0.0
        %536 = vmatpush1.msra.mxu0 0.0
        %537 = vmatprep.subr.mxu0 0.0
        %538 = vmatpush1.msra.mxu0 0.0
        %539 = vmatprep.subr.mxu0 0.0
        %540 = vmatpush1.msra.mxu0 0.0
        %541 = vmatprep.subr.mxu0 0.0
        %542 = vmatpush1.msra.mxu0 0.0
        %543 = vmatprep.subr.mxu0 0.0
        %544 = vmatpush1.msra.mxu0 0.0
        %545 = vmatprep.subr.mxu0 0.0
        %546 = vmatpush1.msra.mxu0 0.0
        %547 = vmatprep.subr.mxu0 0.0
        %548 = vmatpush1.msra.mxu0 0.0
        %549 = vmatprep.subr.mxu0 0.0
        %550 = vmatpush1.msra.mxu0 0.0
        %551 = vmatprep.subr.mxu0 0.0
        %552 = vmatpush1.msra.mxu0 0.0
        %553 = vmatprep.subr.mxu0 0.0
        %554 = vmatpush1.msra.mxu0 0.0
        %555 = vmatprep.subr.mxu0 0.0
        %556 = vmatpush1.msra.mxu0 0.0
        %557 = vmatprep.subr.mxu0 0.0
        %558 = vmatpush1.msra.mxu0 0.0
        %559 = vmatprep.subr.mxu0 0.0
        %560 = vmatpush1.msra.mxu0 0.0
        %561 = vmatprep.subr.mxu0 0.0
        %562 = vmatpush1.msra.mxu0 0.0
        %563 = vmatprep.subr.mxu0 0.0
        %564 = vmatpush1.msra.mxu0 0.0
        %565 = vmatprep.subr.mxu0 0.0
        %566 = vmatpush1.msra.mxu0 0.0
        %567 = vmatprep.subr.mxu0 0.0
        %568 = vmatpush1.msra.mxu0 0.0
        %569 = vmatprep.subr.mxu0 0.0
        %570 = vmatpush1.msra.mxu0 0.0
        %571 = vmatprep.subr.mxu0 0.0
        %572 = vmatpush1.msra.mxu0 0.0
        %573 = vmatprep.mubr.f32.mxu0 0.0
        %574 = vmatmul.mubr.f32.gmra.mrb[0].mxu0 %v310
        %v575 = vpop.f32.mrb[0].mxu0
        %v576 = vadd.f32 0.0, %v575
        %v577 = vpop.f32.mrb[0].mxu0
        %578 = vmatprep.mubr.f32.mxu0 0.0
        %579 = vmatmul.mubr.f32.gmra.mrb[0].mxu0 %v313
        %v580 = vpop.f32.mrb[0].mxu0
        %v581 = vadd.f32 0.0, %v580
        %v582 = vpop.f32.mrb[0].mxu0
        %583 = vdwg.mxu0
        %v584 = vmul.f32 %v576, %v287
        %v585 = vmul.f32 %v581, %v287
        %586 = vadd.xlane.f32.xlu0 %v584
        %v587 = vpop.xlane.xlu0 %586
        %588 = vadd.xlane.f32.xlu0 %v585
        %v589 = vpop.xlane.xlu0 %588
        %v590 = vxor.u32 %v587, 2147483648
        %v591 = vxor.u32 %v589, 2147483648
        %v592 = vmul.f32 %v590, 1.442695
        %v593 = vpow.pop %v592
        %v594 = vmul.f32 %v591, 1.442695
        %v595 = vpow.pop %v594
        %v596 = vadd.f32 %v593, 1.0
        %v597 = vadd.f32 %v595, 1.0
        %v598 = vrcp.pop %v596
        %v599 = vmul.f32 1.0, %v598
        %v600 = vrcp.pop %v597
        %v601 = vmul.f32 1.0, %v600
        %v602 = vmul.f32 %v599, %v576
        %v603 = vmul.f32 %v601, %v581
        %v604 = vadd.f32 %v507, %v602
        %v605 = vadd.f32 %v508, %v603
        %606 = vmatprep.subr.mxu0 0.0
        %607 = vmatpush1.msra.mxu0 %v576
        %608 = vmatprep.subr.mxu0 0.0
        %609 = vmatpush1.msra.mxu0 %v581
        %610 = vmatprep.subr.mxu0 0.0
        %611 = vmatpush1.msra.mxu0 0.0
        %612 = vmatprep.subr.mxu0 0.0
        %613 = vmatpush1.msra.mxu0 0.0
        %614 = vmatprep.subr.mxu0 0.0
        %615 = vmatpush1.msra.mxu0 0.0
        %616 = vmatprep.subr.mxu0 0.0
        %617 = vmatpush1.msra.mxu0 0.0
        %618 = vmatprep.subr.mxu0 0.0
        %619 = vmatpush1.msra.mxu0 0.0
        %620 = vmatprep.subr.mxu0 0.0
        %621 = vmatpush1.msra.mxu0 0.0
        %622 = vmatprep.subr.mxu0 0.0
        %623 = vmatpush1.msra.mxu0 0.0
        %624 = vmatprep.subr.mxu0 0.0
        %625 = vmatpush1.msra.mxu0 0.0
        %626 = vmatprep.subr.mxu0 0.0
        %627 = vmatpush1.msra.mxu0 0.0
        %628 = vmatprep.subr.mxu0 0.0
        %629 = vmatpush1.msra.mxu0 0.0
        %630 = vmatprep.subr.mxu0 0.0
        %631 = vmatpush1.msra.mxu0 0.0
        %632 = vmatprep.subr.mxu0 0.0
        %633 = vmatpush1.msra.mxu0 0.0
        %634 = vmatprep.subr.mxu0 0.0
        %635 = vmatpush1.msra.mxu0 0.0
        %636 = vmatprep.subr.mxu0 0.0
        %637 = vmatpush1.msra.mxu0 0.0
        %638 = vmatprep.subr.mxu0 0.0
        %639 = vmatpush1.msra.mxu0 0.0
        %640 = vmatprep.subr.mxu0 0.0
        %641 = vmatpush1.msra.mxu0 0.0
        %642 = vmatprep.subr.mxu0 0.0
        %643 = vmatpush1.msra.mxu0 0.0
        %644 = vmatprep.subr.mxu0 0.0
        %645 = vmatpush1.msra.mxu0 0.0
        %646 = vmatprep.subr.mxu0 0.0
        %647 = vmatpush1.msra.mxu0 0.0
        %648 = vmatprep.subr.mxu0 0.0
        %649 = vmatpush1.msra.mxu0 0.0
        %650 = vmatprep.subr.mxu0 0.0
        %651 = vmatpush1.msra.mxu0 0.0
        %652 = vmatprep.subr.mxu0 0.0
        %653 = vmatpush1.msra.mxu0 0.0
        %654 = vmatprep.subr.mxu0 0.0
        %655 = vmatpush1.msra.mxu0 0.0
        %656 = vmatprep.subr.mxu0 0.0
        %657 = vmatpush1.msra.mxu0 0.0
        %658 = vmatprep.subr.mxu0 0.0
        %659 = vmatpush1.msra.mxu0 0.0
        %660 = vmatprep.subr.mxu0 0.0
        %661 = vmatpush1.msra.mxu0 0.0
        %662 = vmatprep.subr.mxu0 0.0
        %663 = vmatpush1.msra.mxu0 0.0
        %664 = vmatprep.subr.mxu0 0.0
        %665 = vmatpush1.msra.mxu0 0.0
        %666 = vmatprep.subr.mxu0 0.0
        %667 = vmatpush1.msra.mxu0 0.0
        %668 = vmatprep.subr.mxu0 0.0
        %669 = vmatpush1.msra.mxu0 0.0
        %670 = vmatprep.mubr.f32.mxu0 0.0
        %671 = vmatmul.mubr.f32.gmra.mrb[0].mxu0 %v310
        %v672 = vpop.f32.mrb[0].mxu0
        %v673 = vadd.f32 0.0, %v672
        %v674 = vpop.f32.mrb[0].mxu0
        %675 = vmatprep.mubr.f32.mxu0 0.0
        %676 = vmatmul.mubr.f32.gmra.mrb[0].mxu0 %v313
        %v677 = vpop.f32.mrb[0].mxu0
        %v678 = vadd.f32 0.0, %v677
        %v679 = vpop.f32.mrb[0].mxu0
        %680 = vdwg.mxu0
        %v681 = vmul.f32 %v673, %v287
        %v682 = vmul.f32 %v678, %v287
        %683 = vadd.xlane.f32.xlu0 %v681
        %v684 = vpop.xlane.xlu0 %683
        %685 = vadd.xlane.f32.xlu0 %v682
        %v686 = vpop.xlane.xlu0 %685
        %v687 = vxor.u32 %v684, 2147483648
        %v688 = vxor.u32 %v686, 2147483648
        %v689 = vmul.f32 %v687, 1.442695
        %v690 = vpow.pop %v689
        %v691 = vmul.f32 %v688, 1.442695
        %v692 = vpow.pop %v691
        %v693 = vadd.f32 %v690, 1.0
        %v694 = vadd.f32 %v692, 1.0
        %v695 = vrcp.pop %v693
        %v696 = vmul.f32 1.0, %v695
        %v697 = vrcp.pop %v694
        %v698 = vmul.f32 1.0, %v697
        %v699 = vmul.f32 %v696, %v673
        %v700 = vmul.f32 %v698, %v678
        %v701 = vadd.f32 %v604, %v699
        %v702 = vadd.f32 %v605, %v700
        %v703 = vadd.f32 %v701, %v673
        %v704 = vadd.f32 %v702, %v678
        %705 = vst [vmem:[%s240] sm:$0xff] %v703
        %706 = vst [vmem:[%s240 + $0x8] sm:$0xff] %v704
        %s707 = sand.u32 %s104, 1
        %s708 = scalar_lea.sflag [#allocation4], %s707
        %s709 = sand.u32 %s104, 1
        %s710 = smul.addr %s709, 16
        %s711 = scalar_lea.vmem [#allocation8], %s710
        // Predicated region
        $region45: #{tpu_custom_call.1} parent=31 // pred_check
          %p712 = pneg %p114
        $region46: #{tpu_custom_call.1} parent=31 // pred_check_branch
          %714 = sbr.rel (%p712) target = $region48
        $region47: #{tpu_custom_call.1} parent=31 // pred_region
          %s716 = ssub.s32 256, 256
          %717 = vsyncadd %s708, %s716
          %s718 = smul.addr %s23, 2
          %s719 = smul.addr %s718, 128
          %s720 = scalar_lea.hbm %s3, %s719
          %s721 = sshll.u32 %s711, 4
          %s722 = int_to_ptr.vmem [resolvable:$true] %s721
          %727 = dma.vmem_to_hbm [thread:$0]  %s722, 256, %s720, %s708, 128, 128, 8
        $region48: #{tpu_custom_call.1} parent=31 // pred_fallthru
          _
      $region32: #{tpu_custom_call.1} parent=5 // pred_fallthru
        _
      %p728 = scmp.le.s32.totalorder 2, %s18
      // Predicated region
      $region49: #{tpu_custom_call.1} parent=5 // pred_check
        %p729 = pneg %p728
      $region50: #{tpu_custom_call.1} parent=5 // pred_check_branch
        %731 = sbr.rel (%p729) target = $region52
      $region51: #{tpu_custom_call.1} parent=5 // pred_region
        %s732 = ssub.s32 %s18, 2
        // Predicated region
        $region53: #{tpu_custom_call.1} parent=51 // pred_check
          %p733 = pneg %p120
        $region54: #{tpu_custom_call.1} parent=51 // pred_check_branch
          %735 = sbr.rel (%p733) target = $region56
        $region55: #{tpu_custom_call.1} parent=51 // pred_region
          %s736 = sand.u32 %s105, 1
          %s737 = scalar_lea.sflag [#allocation4], %s736
          %s738 = sand.u32 %s105, 1
          %s739 = smul.addr %s738, 16
          %s740 = scalar_lea.vmem [#allocation8], %s739
          %741 = dma.done %s737, 256
        $region56: #{tpu_custom_call.1} parent=51 // pred_fallthru
          _
      $region52: #{tpu_custom_call.1} parent=5 // pred_fallthru
        _
    $region6: #{tpu_custom_call.1} parent=1 // loop_footer
      %s22 = sadd.s32 1, %s18
    $region7: #{tpu_custom_call.1} parent=1 // loop_footer_branch
      %17 = sbr.rel target = $region3
    $region8: #{tpu_custom_call.1} parent=1 // loop_exit
      _
    %742 = vsyncpa [#allocation3], 1
    %s743 = scalar_lea.sflag [#allocation3], 1
    %744 = vsyncpa %s743, 1
    %745 = vsyncpa [#allocation6], 1
    %s746 = scalar_lea.sflag [#allocation6], 1
    %747 = vsyncpa %s746, 1
    %748 = vsyncpa [#allocation4], 1
    %s749 = scalar_lea.sflag [#allocation4], 1
    %750 = vsyncpa %s749, 1

</llo_original>
